<compile_context>
chip_gen: v7x
topology: tpu7x:2x2x1
jax: 0.10.0
libtpu: 0.0.40
codegen_flags: <defaults>
</compile_context>

<pallas_src>
import functools
import math

import jax
import jax.numpy as jnp
from jax import lax
from jax.experimental import pallas as pl
from jax.experimental.pallas import tpu as pltpu

VMEM_LIMIT = 32 * 1024 * 1024  # explicit scoped-VMEM budget (fits v5e/v6e/v7x)
IN_EPS = 1e-5                  # nn.InstanceNorm2d default eps


# ----------------------------------------------------------------------------
# small helpers
# ----------------------------------------------------------------------------
def _round_up(x, m):
    return (x + m - 1) // m * m


def _pick_tile(total, pref, quantum=128):
    """Largest multiple of `quantum` that divides `total` and is <= pref."""
    if total <= quantum:
        return total
    best = quantum
    t = quantum
    while t <= min(pref, total):
        if total % t == 0:
            best = t
        t += quantum
    return best


# ----------------------------------------------------------------------------
# Pallas kernel 1: K-tiled matmul with fused bias / residual / activation
# ----------------------------------------------------------------------------
def _make_mm_kernel(has_bias, has_res, act):
    def kernel(*refs):
        idx = 0
        a_ref = refs[idx]; idx += 1
        w_ref = refs[idx]; idx += 1
        b_ref = None
        if has_bias:
            b_ref = refs[idx]; idx += 1
        r_ref = None
        if has_res:
            r_ref = refs[idx]; idx += 1
        o_ref = refs[idx]; idx += 1
        acc_ref = refs[idx]

        k = pl.program_id(2)

        @pl.when(k == 0)
        def _init():
            acc_ref[...] = jnp.zeros_like(acc_ref)

        acc_ref[...] += jnp.dot(a_ref[...], w_ref[...],
                                preferred_element_type=jnp.float32)

        @pl.when(k == pl.num_programs(2) - 1)
        def _finalize():
            out = acc_ref[...]
            if has_bias:
                out = out + b_ref[...].astype(jnp.float32)
            if has_res:
                out = out + r_ref[...].astype(jnp.float32)
            if act == 'relu':
                out = jnp.maximum(out, 0.0)
            elif act == 'tanh':
                out = jnp.tanh(out)
            o_ref[...] = out.astype(o_ref.dtype)

    return kernel


def pallas_matmul(a, w_mat, bias=None, residual=None, act=None,
                  out_dtype=jnp.bfloat16, tm=512, tn=128, tk=512):
    """a: (M, K) bf16 patches; w_mat: (K, N) bf16; bias: (N,) f32; residual: (M, N)."""
    M, K = a.shape
    K2, N = w_mat.shape
    assert K == K2 and K % 128 == 0 and N % 128 == 0, (K, N)

    tm = min(tm, _round_up(M, 8))
    tn = _pick_tile(N, tn)
    tk = _pick_tile(K, tk)
    M_pad = _round_up(M, tm)
    if M_pad != M:
        a = jnp.pad(a, ((0, M_pad - M), (0, 0)))
        if residual is not None:
            residual = jnp.pad(residual, ((0, M_pad - M), (0, 0)))

    a = a.astype(jnp.bfloat16)
    w_mat = w_mat.astype(jnp.bfloat16)

    grid = (M_pad // tm, N // tn, K // tk)
    inputs = [a, w_mat]
    in_specs = [
        pl.BlockSpec((tm, tk), lambda i, j, k: (i, k)),
        pl.BlockSpec((tk, tn), lambda i, j, k: (k, j)),
    ]
    if bias is not None:
        inputs.append(bias.reshape(1, N).astype(jnp.float32))
        in_specs.append(pl.BlockSpec((1, tn), lambda i, j, k: (0, j)))
    if residual is not None:
        inputs.append(residual)
        in_specs.append(pl.BlockSpec((tm, tn), lambda i, j, k: (i, j)))

    out = pl.pallas_call(
        _make_mm_kernel(bias is not None, residual is not None, act),
        out_shape=jax.ShapeDtypeStruct((M_pad, N), out_dtype),
        grid=grid,
        in_specs=in_specs,
        out_specs=pl.BlockSpec((tm, tn), lambda i, j, k: (i, j)),
        scratch_shapes=[pltpu.VMEM((tm, tn), jnp.float32)],
        compiler_params=pltpu.CompilerParams(
            dimension_semantics=("parallel", "parallel", "arbitrary"),
            vmem_limit_bytes=VMEM_LIMIT),
    )(*inputs)
    if M_pad != M:
        out = out[:M]
    return out


# ----------------------------------------------------------------------------
# Pallas kernel 2: fused InstanceNorm / AdaIN (+ affine, + skip add, + ReLU)
# ----------------------------------------------------------------------------
def _make_in_kernel(affine, has_res, relu, eps):
    def kernel(*refs):
        idx = 0
        x_ref = refs[idx]; idx += 1
        g_ref = b_ref = r_ref = None
        if affine:
            g_ref = refs[idx]; b_ref = refs[idx + 1]; idx += 2
        if has_res:
            r_ref = refs[idx]; idx += 1
        o_ref = refs[idx]

        x = x_ref[0].astype(jnp.float32)                # (HW, tc)
        mean = jnp.mean(x, axis=0, keepdims=True)       # (1, tc)
        xc = x - mean
        var = jnp.mean(xc * xc, axis=0, keepdims=True)
        y = xc * lax.rsqrt(var + eps)
        if affine:
            y = y * g_ref[0].astype(jnp.float32) + b_ref[0].astype(jnp.float32)
        if has_res:
            y = y + r_ref[0].astype(jnp.float32)
        if relu:
            y = jnp.maximum(y, 0.0)
        o_ref[0] = y.astype(o_ref.dtype)

    return kernel


def pallas_instance_norm(x, gamma=None, beta=None, residual=None, relu=False,
                         eps=IN_EPS):
    """Per-(batch, channel) instance norm over H*W, optional affine/skip/ReLU."""
    B, H, W, C = x.shape
    HW = H * W
    x2 = x.reshape(B, HW, C)
    tc = _pick_tile(C, 128)
    grid = (B, C // tc)

    x_spec = pl.BlockSpec((1, HW, tc), lambda b, c: (b, 0, c))
    inputs = [x2]
    in_specs = [x_spec]
    affine = gamma is not None
    if affine:
        inputs += [gamma.reshape(1, 1, C), beta.reshape(1, 1, C)]
        in_specs += [pl.BlockSpec((1, 1, tc), lambda b, c: (0, 0, c))] * 2
    if residual is not None:
        inputs.append(residual.reshape(B, HW, C))
        in_specs.append(pl.BlockSpec((1, HW, tc), lambda b, c: (b, 0, c)))

    out = pl.pallas_call(
        _make_in_kernel(affine, residual is not None, relu, eps),
        out_shape=jax.ShapeDtypeStruct((B, HW, C), jnp.bfloat16),
        grid=grid,
        in_specs=in_specs,
        out_specs=x_spec,
        compiler_params=pltpu.CompilerParams(
            dimension_semantics=("parallel", "parallel"),
            vmem_limit_bytes=VMEM_LIMIT),
    )(*inputs)
    return out.reshape(B, H, W, C)


# ----------------------------------------------------------------------------
# Pallas kernel 3: tiled 2x2 / stride-2 average pool (octave high -> low)
# ----------------------------------------------------------------------------
def _avgpool_kernel(a_ref, b_ref, c_ref, d_ref, o_ref):
    s = (a_ref[...].astype(jnp.float32) + b_ref[...].astype(jnp.float32)
         + c_ref[...].astype(jnp.float32) + d_ref[...].astype(jnp.float32))
    o_ref[...] = (s * 0.25).astype(o_ref.dtype)


def pallas_avgpool2x2(x):
    B, H, W, C = x.shape
    Ho, Wo = H // 2, W // 2
    M = B * Ho * Wo
    views = [x[:, dy::2, dx::2, :].reshape(M, C)
             for dy in (0, 1) for dx in (0, 1)]
    tm = min(512, _round_up(M, 8))
    M_pad = _round_up(M, tm)
    if M_pad != M:
        views = [jnp.pad(v, ((0, M_pad - M), (0, 0))) for v in views]
    tc = _pick_tile(C, 128)
    grid = (M_pad // tm, C // tc)
    spec = pl.BlockSpec((tm, tc), lambda i, j: (i, j))
    out = pl.pallas_call(
        _avgpool_kernel,
        out_shape=jax.ShapeDtypeStruct((M_pad, C), x.dtype),
        grid=grid,
        in_specs=[spec] * 4,
        out_specs=spec,
        compiler_params=pltpu.CompilerParams(
            dimension_semantics=("parallel", "parallel"),
            vmem_limit_bytes=VMEM_LIMIT),
    )(*views)
    if M_pad != M:
        out = out[:M]
    return out.reshape(B, Ho, Wo, C)


# ----------------------------------------------------------------------------
# conv wrapper (im2col in JAX, matmul in Pallas) and octave-conv composition
# ----------------------------------------------------------------------------
def _im2col(x, ksize, pad):
    B, H, W, C = x.shape
    xp = jnp.pad(x, ((0, 0), (pad, pad), (pad, pad), (0, 0))) if pad > 0 else x
    Ho = H + 2 * pad - ksize + 1
    Wo = W + 2 * pad - ksize + 1
    cols = [xp[:, kh:kh + Ho, kw:kw + Wo, :]
            for kh in range(ksize) for kw in range(ksize)]
    a = jnp.concatenate(cols, axis=-1).reshape(B * Ho * Wo, ksize * ksize * C)
    return a, Ho, Wo


def conv2d(x, w_mat, bias=None, ksize=3, pad=1, residual=None, act=None,
           out_dtype=jnp.bfloat16):
    """stride-1, zero-padded conv. w_mat: (k*k*Cin_pad, Cout_pad) bf16."""
    # TODO(synk): read the padded NHWC tensor directly inside the kernel
    # (tap-wise K accumulation) to avoid materializing the k*k im2col matrix.
    B, H, W, C = x.shape
    a, Ho, Wo = _im2col(x, ksize, pad)
    N = w_mat.shape[1]
    res_flat = (residual.reshape(B * Ho * Wo, N)
                if residual is not None else None)
    out = pallas_matmul(a, w_mat, bias=bias, residual=res_flat, act=act,
                        out_dtype=out_dtype)
    return out.reshape(B, Ho, Wo, N)


def upsample2_nearest(x):
    x = jnp.repeat(x, 2, axis=1)
    x = jnp.repeat(x, 2, axis=2)
    return x


def oct_conv_normal(h, l, p, ksize=3, pad=1):
    """Octave conv, type='normal':  (h, l) -> (y_h, y_l)."""
    # low -> high: conv then nearest-upsample x2; fused as residual of conv_hh
    t_lh = upsample2_nearest(conv2d(l, p['w_lh'], None, ksize, pad))
    y_h = conv2d(h, p['w_hh'], p['b_h'], ksize, pad, residual=t_lh)
    # high -> low: avgpool x2 then conv; fused as residual of conv_ll
    t_hl = conv2d(pallas_avgpool2x2(h), p['w_hl'], None, ksize, pad)
    y_l = conv2d(l, p['w_ll'], p['b_l'], ksize, pad, residual=t_hl)
    return y_h, y_l


def oct_conv_last(h, l, p, ksize=7, pad=3, act='tanh', out_dtype=jnp.float32):
    """Octave conv, type='last': (h, l) -> full-resolution single tensor."""
    t = upsample2_nearest(conv2d(l, p['w_l'], None, ksize, pad))
    return conv2d(h, p['w_h'], p['b'], ksize, pad, residual=t, act=act,
                  out_dtype=out_dtype)


def residual_oct_block(h, l, p):
    """ResidualOctBlock_basic: conv3x3 -> AdaIN -> ReLU -> conv3x3 -> AdaIN, + skip."""
    oh, ol = oct_conv_normal(h, l, p['conv_a'])
    oh = pallas_instance_norm(oh, p['g_ah'], p['bt_ah'], relu=True)
    ol = pallas_instance_norm(ol, p['g_al'], p['bt_al'], relu=True)
    oh, ol = oct_conv_normal(oh, ol, p['conv_b'])
    oh = pallas_instance_norm(oh, p['g_bh'], p['bt_bh'], residual=h)
    ol = pallas_instance_norm(ol, p['g_bl'], p['bt_bl'], residual=l)
    return oh, ol


# ----------------------------------------------------------------------------
# Parameter init (deterministic, synthetic, channel-padded to 128 lanes)
# ----------------------------------------------------------------------------
def _conv_w(key, cin, cout, k):
    cin_p, cout_p = _round_up(cin, 128), _round_up(cout, 128)
    kw_, kb_ = jax.random.split(key)
    w = jax.random.normal(kw_, (k, k, cin_p, cout_p), jnp.float32)
    w = w / math.sqrt(cin * k * k)
    w = w * (jnp.arange(cin_p) < cin)[None, None, :, None]
    w = w * (jnp.arange(cout_p) < cout)[None, None, None, :]
    w_mat = w.reshape(k * k * cin_p, cout_p).astype(jnp.bfloat16)
    b = jax.random.normal(kb_, (cout_p,), jnp.float32) * 0.01
    b = b * (jnp.arange(cout_p) < cout)
    return w_mat, b


def _oct_normal_params(key, cin, cout, k):
    ci, co = cin // 2, cout // 2          # alpha_in = alpha_out = 0.5
    k1, k2, k3, k4 = jax.random.split(key, 4)
    w_hh, b_h = _conv_w(k1, ci, co, k)
    w_lh, _ = _conv_w(k2, ci, co, k)
    w_ll, b_l = _conv_w(k3, ci, co, k)
    w_hl, _ = _conv_w(k4, ci, co, k)
    return {'w_hh': w_hh, 'b_h': b_h, 'w_lh': w_lh,
            'w_ll': w_ll, 'b_l': b_l, 'w_hl': w_hl}


def _oct_last_params(key, cin, cout, k):
    ci = cin // 2
    k1, k2 = jax.random.split(key)
    w_h, b = _conv_w(k1, ci, cout, k)
    w_l, _ = _conv_w(k2, ci, cout, k)
    return {'w_h': w_h, 'w_l': w_l, 'b': b}


def _adain_params(key, c):
    c_p = _round_up(c, 128)
    kg, kb = jax.random.split(key)
    mask = (jnp.arange(c_p) < c).astype(jnp.float32)
    g = (1.0 + 0.1 * jax.random.normal(kg, (c_p,), jnp.float32)) * mask
    b = 0.1 * jax.random.normal(kb, (c_p,), jnp.float32) * mask
    return g, b


def _res_block_params(key, cdim):
    ch = cdim // 2
    ks = jax.random.split(key, 6)
    p = {'conv_a': _oct_normal_params(ks[0], cdim, cdim, 3),
         'conv_b': _oct_normal_params(ks[1], cdim, cdim, 3)}
    p['g_ah'], p['bt_ah'] = _adain_params(ks[2], ch)
    p['g_al'], p['bt_al'] = _adain_params(ks[3], ch)
    p['g_bh'], p['bt_bh'] = _adain_params(ks[4], ch)
    p['g_bl'], p['bt_bl'] = _adain_params(ks[5], ch)
    return p


def init_params(key, dim, out_dim):
    cdim = 4 * dim                         # conv_dim of the residual blocks
    keys = jax.random.split(key, 16)
    return {
        'out_dim': out_dim,
        'res_blocks': [_res_block_params(keys[i], cdim) for i in range(6)],
        'conv1': _oct_normal_params(keys[6], cdim, cdim // 2, 3),
        'conv2': _oct_normal_params(keys[7], cdim // 2, cdim // 4, 3),
        'conv3': _oct_last_params(keys[8], cdim // 4, out_dim, 7),
    }


# ----------------------------------------------------------------------------
# Forward (== Decoder.forward with alpha_in = alpha_out = 0.5)
# ----------------------------------------------------------------------------
def decoder_forward(params, x_h, x_l, alpha_in=0.5, alpha_out=0.5):
    del alpha_in, alpha_out  # the 0.5/0.5 channel split is baked into params
    h, l = x_h, x_l
    # Res1 .. Res6
    for rb in params['res_blocks']:
        h, l = residual_oct_block(h, l, rb)
    # up1 -> conv1 -> InstanceNorm -> ReLU
    h, l = upsample2_nearest(h), upsample2_nearest(l)
    h, l = oct_conv_normal(h, l, params['conv1'])
    h = pallas_instance_norm(h, relu=True)
    l = pallas_instance_norm(l, relu=True)
    # up2 -> conv2 -> InstanceNorm -> ReLU
    h, l = upsample2_nearest(h), upsample2_nearest(l)
    h, l = oct_conv_normal(h, l, params['conv2'])
    h = pallas_instance_norm(h, relu=True)
    l = pallas_instance_norm(l, relu=True)
    # conv3 (octave 'last', 7x7) + tanh, fused in the conv epilogue
    out = oct_conv_last(h, l, params['conv3'], act='tanh')
    return out[..., :params['out_dim']]


# ----------------------------------------------------------------------------
# small correctness self-check of the conv path (Pallas vs lax.conv)
# ----------------------------------------------------------------------------
def _self_check_conv():
    key = jax.random.PRNGKey(1)
    kx, kw = jax.random.split(key)
    cin, cout, k = 16, 16, 3
    cin_p = _round_up(cin, 128)
    x = jax.random.normal(kx, (1, 8, 8, cin_p), jnp.float32)
    x = (x * (jnp.arange(cin_p) < cin)).astype(jnp.bfloat16)
    w_mat, b = _conv_w(kw, cin, cout, k)
    got = conv2d(x, w_mat, b, ksize=k, pad=1).astype(jnp.float32)[..., :cout]
    w4 = w_mat.astype(jnp.float32).reshape(k, k, cin_p, -1)
    ref = lax.conv_general_dilated(
        x.astype(jnp.float32), w4, window_strides=(1, 1),
        padding=((1, 1), (1, 1)),
        dimension_numbers=('NHWC', 'HWIO', 'NHWC')) + b
    err = float(jnp.max(jnp.abs(got - ref[..., :cout])))
    assert err < 0.06, f"conv self-check failed, max abs err = {err}"


if __name__ == "__main__":
    _self_check_conv()

    DIM = 8            # Decoder(dim=8): residual blocks run at 4*dim = 32 ch
    OUT_DIM = 3
    B, H, W = 2, 16, 16
    CH = (4 * DIM) // 2          # high/low channel split (alpha = 0.5)
    CH_P = _round_up(CH, 128)    # lane-dense padded channel count

    key = jax.random.PRNGKey(0)
    kh_, kl_, kp_ = jax.random.split(key, 3)

    mask = (jnp.arange(CH_P) < CH).astype(jnp.bfloat16)
    x_h = (jax.random.normal(kh_, (B, H, W, CH_P), jnp.float32)
           .astype(jnp.bfloat16) * mask)
    x_l = (jax.random.normal(kl_, (B, H // 2, W // 2, CH_P), jnp.float32)
           .astype(jnp.bfloat16) * mask)

    params = init_params(kp_, DIM, OUT_DIM)
    fwd = jax.jit(functools.partial(decoder_forward, params))
    out = fwd(x_h, x_l)
    jax.block_until_ready(out)

    assert out.shape == (B, 4 * H, 4 * W, OUT_DIM), out.shape
    assert bool(jnp.all(jnp.isfinite(out)))
    assert bool(jnp.all(jnp.abs(out) <= 1.0 + 1e-3))   # tanh output range
    print("KERNEL_OK")
</pallas_src>

<mosaic_0001>
module attributes {stable_mosaic.version = 11 : i64} {
  func.func @kernel(%arg0: i32, %arg1: i32, %arg2: i32, %arg3: memref<64x384xbf16, #tpu.memory_space<vmem>>, %arg4: memref<384x128xbf16, #tpu.memory_space<vmem>>, %arg5: memref<1x128xf32, #tpu.memory_space<vmem>>, %arg6: memref<64x128xbf16, #tpu.memory_space<vmem>>, %arg7: memref<64x128xf32, #tpu.memory_space<vmem>>) attributes {dimension_semantics = [#tpu.dimension_semantics<parallel>, #tpu.dimension_semantics<parallel>, #tpu.dimension_semantics<arbitrary>], iteration_bounds = array<i64: 1, 1, 3>, scalar_prefetch = 0 : i64, scratch_operands = 1 : i64, tpu.core_type = #tpu.core_type<tc>, window_params = [{transform_indices = @transform_0, window_bounds = array<i64: 64, 384>}, {transform_indices = @transform_1, window_bounds = array<i64: 384, 128>}, {transform_indices = @transform_2, window_bounds = array<i64: 1, 128>}, {transform_indices = @transform_3, window_bounds = array<i64: 64, 128>}]} {
    %c0_i32 = arith.constant 0 : i32
    %0 = arith.cmpi eq, %arg2, %c0_i32 : i32
    %1 = arith.extui %0 : i1 to i32
    %c0_i32_0 = arith.constant 0 : i32
    %2 = arith.cmpi ne, %1, %c0_i32_0 : i32
    scf.if %2 {
      %cst_9 = arith.constant 0.000000e+00 : f32
      %12 = vector.broadcast %cst_9 : f32 to vector<64x128xf32>
      %c0_10 = arith.constant 0 : index
      %c0_11 = arith.constant 0 : index
      %13 = vector.load %arg7[%c0_10, %c0_11] : memref<64x128xf32, #tpu.memory_space<vmem>>, vector<64x128xf32>
      tpu.vector_store %arg7[%c0_10, %c0_11], %12 {strides = array<i32>} : memref<64x128xf32, #tpu.memory_space<vmem>>, vector<64x128xf32>,
    } else {
    }
    %c0 = arith.constant 0 : index
    %c0_1 = arith.constant 0 : index
    %3 = vector.load %arg7[%c0, %c0_1] : memref<64x128xf32, #tpu.memory_space<vmem>>, vector<64x128xf32>
    %c0_2 = arith.constant 0 : index
    %c0_3 = arith.constant 0 : index
    %4 = vector.load %arg3[%c0_2, %c0_3] : memref<64x384xbf16, #tpu.memory_space<vmem>>, vector<64x384xbf16>
    %c0_4 = arith.constant 0 : index
    %c0_5 = arith.constant 0 : index
    %5 = vector.load %arg4[%c0_4, %c0_5] : memref<384x128xbf16, #tpu.memory_space<vmem>>, vector<384x128xbf16>
    %cst = arith.constant dense<0.000000e+00> : vector<64x128xf32>
    %6 = tpu.matmul %4, %5, %cst {dimension_numbers = #tpu.dot_dimension_numbers<[1], [0], [0], [1], [0, 0, 1, 1], [], []>} : vector<64x384xbf16>, vector<384x128xbf16>, vector<64x128xf32> -> vector<64x128xf32>
    %7 = arith.addf %3, %6 : vector<64x128xf32>
    %c0_6 = arith.constant 0 : index
    %c0_7 = arith.constant 0 : index
    %8 = vector.load %arg7[%c0_6, %c0_7] : memref<64x128xf32, #tpu.memory_space<vmem>>, vector<64x128xf32>
    tpu.vector_store %arg7[%c0_6, %c0_7], %7 {strides = array<i32>} : memref<64x128xf32, #tpu.memory_space<vmem>>, vector<64x128xf32>,
    %c2_i32 = arith.constant 2 : i32
    %9 = arith.cmpi eq, %arg2, %c2_i32 : i32
    %10 = arith.extui %9 : i1 to i32
    %c0_i32_8 = arith.constant 0 : i32
    %11 = arith.cmpi ne, %10, %c0_i32_8 : i32
    scf.if %11 {
      %c0_9 = arith.constant 0 : index
      %c0_10 = arith.constant 0 : index
      %12 = vector.load %arg7[%c0_9, %c0_10] : memref<64x128xf32, #tpu.memory_space<vmem>>, vector<64x128xf32>
      %c0_11 = arith.constant 0 : index
      %c0_12 = arith.constant 0 : index
      %13 = vector.load %arg5[%c0_11, %c0_12] : memref<1x128xf32, #tpu.memory_space<vmem>>, vector<1x128xf32>
      %14 = vector.broadcast %13 : vector<1x128xf32> to vector<64x128xf32>
      %15 = arith.addf %12, %14 : vector<64x128xf32>
      %16 = arith.truncf %15 : vector<64x128xf32> to vector<64x128xbf16>
      %c0_13 = arith.constant 0 : index
      %c0_14 = arith.constant 0 : index
      %17 = vector.load %arg6[%c0_13, %c0_14] : memref<64x128xbf16, #tpu.memory_space<vmem>>, vector<64x128xbf16>
      tpu.vector_store %arg6[%c0_13, %c0_14], %16 {strides = array<i32>} : memref<64x128xbf16, #tpu.memory_space<vmem>>, vector<64x128xbf16>,
    } else {
    }
    return
  }
  func.func @transform_0(%arg0: i32, %arg1: i32, %arg2: i32) -> (i32, i32) {
    %c0_i32 = arith.constant 0 : i32
    return %arg0, %arg2 : i32, i32
  }
  func.func @transform_1(%arg0: i32, %arg1: i32, %arg2: i32) -> (i32, i32) {
    %c0_i32 = arith.constant 0 : i32
    return %arg2, %arg1 : i32, i32
  }
  func.func @transform_2(%arg0: i32, %arg1: i32, %arg2: i32) -> (i32, i32) {
    %c0_i32 = arith.constant 0 : i32
    %c0_i32_0 = arith.constant 0 : i32
    return %c0_i32, %arg1 : i32, i32
  }
  func.func @transform_3(%arg0: i32, %arg1: i32, %arg2: i32) -> (i32, i32) {
    %c0_i32 = arith.constant 0 : i32
    return %arg0, %arg1 : i32, i32
  }
}

</mosaic_0001>

<llo_original>
// kernel: tpu_custom_call.1
$region0: #{tpu_custom_call.1}
  #allocation0 [shape = 'u32[]', space=smem, size = 0x4, offset = 0x4, fixed_abs, tag = 'smem constant byte address 0x4 - core index']
  #allocation1 [shape = 'u32[144,128]{1,0:T(1,128)}', space=vmem, size = 0x12000, scoped, tag = 'internal scratch']
  #allocation2 [shape = 'f32[64,128]{1,0:T(8,128)}', space=vmem, size = 0x8000, scoped, tag = 'scratch operand']
  %s0 = inlined_call_operand.hbm [shape: bf16[64,1152], index: 0, kind: input, shape index: {}]
  %s1 = inlined_call_operand.hbm [shape: bf16[1152,128], index: 1, kind: input, shape index: {}]
  %s2 = inlined_call_operand.vmem [shape: f32[1,128], index: 2, kind: input, shape index: {}]
  %s3 = inlined_call_operand.hbm [shape: bf16[64,128], index: 3, kind: output, shape index: {}]
  %s4 = sld [smem:[#allocation0]]
  $region61: #{tpu_custom_call.1} parent=0
    _
  %s6 = ssub.s32 1, %s4
  %s7 = scalar_select 0, %s6, %s4
  $region1: #{tpu_custom_call.1} parent=0
    #allocation3 [shape = 'u8[98304]{0}', space=vmem, size = 0x18000, scoped, tag = 'input window, operand 0']
    #allocation4 [shape = 's32[2]{0}', space=sflag, size = 0x8, scoped, tag = 'scoped memory for tpu_custom_call.1']
    #allocation5 [shape = 's32[2]{0}', space=sflag, size = 0x8, scoped, tag = 'scoped memory for tpu_custom_call.1']
    #allocation6 [shape = 'u8[196608]{0}', space=vmem, size = 0x30000, scoped, tag = 'input window, operand 1']
    #allocation7 [shape = 's32[2]{0}', space=sflag, size = 0x8, scoped, tag = 'scoped memory for tpu_custom_call.1']
    #allocation8 [shape = 'u8[16384]{0}', space=vmem, size = 0x4000, scoped, tag = 'output window, operand 0, single buffered']
    %8 = vsyncpa [#allocation4], 0
    %s9 = scalar_lea.sflag [#allocation4], 1
    %10 = vsyncpa %s9, 0
    %11 = vsyncpa [#allocation7], 0
    %s12 = scalar_lea.sflag [#allocation7], 1
    %13 = vsyncpa %s12, 0
    %14 = vsyncpa [#allocation5], 0
    loop: start=0, step=1, limit=5
    $region2: #{tpu_custom_call.1} parent=1 // loop_pre_header
      _
    $region3: #{tpu_custom_call.1} parent=1 // loop_header
      %s16 = sphi 0, %s20
      %p17 = scmp.ge.s32.totalorder %s16, 5
      %s23 = sphi 0, %s42
      %s24 = sphi 0, %s38
      %s25 = sphi 0, %s34
      %s26 = sphi 0, %s23
      %s27 = sphi 0, %s24
      %s28 = sphi 0, %s25
      %s29 = sphi 0, %s26
      %s30 = sphi 0, %s27
      %s31 = sphi 0, %s28
      %s47 = sphi 0, %s49
      %s50 = sphi 0, %s47
      %s51 = sphi 0, %s50
      %s67 = sphi 0, %s51
      %s75 = sphi 0, %s77
      %s78 = sphi 0, %s75
      %s79 = sphi 0, %s78
      %s95 = sphi 0, %s79
      %s101 = sphi 0, %s103
      %s104 = sphi 0, %s101
      %s105 = sphi 0, %s104
      %s121 = sphi 0, %s105
      %s129 = sphi 0, %s131
      %s132 = sphi 0, %s129
      %s133 = sphi 0, %s132
      %s149 = sphi 0, %s133
    $region4: #{tpu_custom_call.1} parent=1 // loop_header_branch
      %19 = sbr.rel (%p17) target = $region8
    $region5: #{tpu_custom_call.1} parent=1 // loop_body
      %s21 = ssub.s32 %s16, 1
      %s22 = ssub.s32 %s16, 2
      %s32 = sadd.s32 1, %s25
      %p33 = scmp.ge.s32.totalorder %s32, 3
      %s34 = scalar_select %p33, 0, %s32
      %s35 = sadd.s32 1, %s24
      %s36 = scalar_select %p33, %s35, %s24
      %p37 = scmp.ge.s32.totalorder %s36, 1
      %s38 = scalar_select %p37, 0, %s36
      %s39 = sadd.s32 1, %s23
      %s40 = scalar_select %p37, %s39, %s23
      %p41 = scmp.ge.s32.totalorder %s40, 1
      %s42 = scalar_select %p41, 0, %s40
      %s43 = ssub.s32 %s23, %s42
      %s44 = ssub.s32 %s25, %s34
      %s45 = sor.u32 %s43, %s44
      %p46 = scmp.eq.s32.totalorder %s45, 0
      %s48 = sadd.s32 %s47, 1
      %s49 = scalar_select %p46, %s47, %s48
      %p52 = pneg %p46
      %p53 = scmp.eq.s32.totalorder %s16, 2
      %p54 = por %p52, %p53
      %p55 = scmp.ne.s32.totalorder %s47, %s50
      %p56 = scmp.eq.s32.totalorder %s16, 0
      %p57 = por %p55, %p56
      %p58 = scmp.ne.s32.totalorder %s47, %s50
      %p59 = scmp.eq.s32.totalorder %s21, 2
      %p60 = por %p58, %p59
      %p61 = scmp.ne.s32.totalorder %s50, %s51
      %p62 = scmp.eq.s32.totalorder %s21, 0
      %p63 = por %p61, %p62
      %p64 = scmp.ne.s32.totalorder %s50, %s51
      %p65 = scmp.eq.s32.totalorder %s22, 2
      %p66 = por %p64, %p65
      %p68 = scmp.ne.s32.totalorder %s51, %s67
      %p69 = scmp.eq.s32.totalorder %s22, 0
      %p70 = por %p68, %p69
      %s71 = ssub.s32 %s25, %s34
      %s72 = ssub.s32 %s24, %s38
      %s73 = sor.u32 %s71, %s72
      %p74 = scmp.eq.s32.totalorder %s73, 0
      %s76 = sadd.s32 %s75, 1
      %s77 = scalar_select %p74, %s75, %s76
      %p80 = pneg %p74
      %p81 = scmp.eq.s32.totalorder %s16, 2
      %p82 = por %p80, %p81
      %p83 = scmp.ne.s32.totalorder %s75, %s78
      %p84 = scmp.eq.s32.totalorder %s16, 0
      %p85 = por %p83, %p84
      %p86 = scmp.ne.s32.totalorder %s75, %s78
      %p87 = scmp.eq.s32.totalorder %s21, 2
      %p88 = por %p86, %p87
      %p89 = scmp.ne.s32.totalorder %s78, %s79
      %p90 = scmp.eq.s32.totalorder %s21, 0
      %p91 = por %p89, %p90
      %p92 = scmp.ne.s32.totalorder %s78, %s79
      %p93 = scmp.eq.s32.totalorder %s22, 2
      %p94 = por %p92, %p93
      %p96 = scmp.ne.s32.totalorder %s79, %s95
      %p97 = scmp.eq.s32.totalorder %s22, 0
      %p98 = por %p96, %p97
      %s99 = ssub.s32 %s24, %s38
      %p100 = scmp.eq.s32.totalorder %s99, 0
      %s102 = sadd.s32 %s101, 1
      %s103 = scalar_select %p100, %s101, %s102
      %p106 = pneg %p100
      %p107 = scmp.eq.s32.totalorder %s16, 2
      %p108 = por %p106, %p107
      %p109 = scmp.ne.s32.totalorder %s101, %s104
      %p110 = scmp.eq.s32.totalorder %s16, 0
      %p111 = por %p109, %p110
      %p112 = scmp.ne.s32.totalorder %s101, %s104
      %p113 = scmp.eq.s32.totalorder %s21, 2
      %p114 = por %p112, %p113
      %p115 = scmp.ne.s32.totalorder %s104, %s105
      %p116 = scmp.eq.s32.totalorder %s21, 0
      %p117 = por %p115, %p116
      %p118 = scmp.ne.s32.totalorder %s104, %s105
      %p119 = scmp.eq.s32.totalorder %s22, 2
      %p120 = por %p118, %p119
      %p122 = scmp.ne.s32.totalorder %s105, %s121
      %p123 = scmp.eq.s32.totalorder %s22, 0
      %p124 = por %p122, %p123
      %s125 = ssub.s32 %s23, %s42
      %s126 = ssub.s32 %s24, %s38
      %s127 = sor.u32 %s125, %s126
      %p128 = scmp.eq.s32.totalorder %s127, 0
      %s130 = sadd.s32 %s129, 1
      %s131 = scalar_select %p128, %s129, %s130
      %p134 = pneg %p128
      %p135 = scmp.eq.s32.totalorder %s16, 2
      %p136 = por %p134, %p135
      %p137 = scmp.ne.s32.totalorder %s129, %s132
      %p138 = scmp.eq.s32.totalorder %s16, 0
      %p139 = por %p137, %p138
      %p140 = scmp.ne.s32.totalorder %s129, %s132
      %p141 = scmp.eq.s32.totalorder %s21, 2
      %p142 = por %p140, %p141
      %p143 = scmp.ne.s32.totalorder %s132, %s133
      %p144 = scmp.eq.s32.totalorder %s21, 0
      %p145 = por %p143, %p144
      %p146 = scmp.ne.s32.totalorder %s132, %s133
      %p147 = scmp.eq.s32.totalorder %s22, 2
      %p148 = por %p146, %p147
      %p150 = scmp.ne.s32.totalorder %s133, %s149
      %p151 = scmp.eq.s32.totalorder %s22, 0
      %p152 = por %p150, %p151
      %p153 = scmp.le.s32.totalorder 1, %s16
      %p154 = scmp.lt.s32.totalorder %s16, 4
      %p155 = pnand %p153, %p154
      %p156 = pneg %p155
      // Predicated region
      $region9: #{tpu_custom_call.1} parent=5 // pred_check
        _
      $region10: #{tpu_custom_call.1} parent=5 // pred_check_branch
        %158 = sbr.rel (%p155) target = $region12
      $region11: #{tpu_custom_call.1} parent=5 // pred_region
        %s159 = ssub.s32 %s16, 1
        // Predicated region
        $region13: #{tpu_custom_call.1} parent=11 // pred_check
          %p160 = pneg %p117
        $region14: #{tpu_custom_call.1} parent=11 // pred_check_branch
          %162 = sbr.rel (%p160) target = $region16
        $region15: #{tpu_custom_call.1} parent=11 // pred_region
          %p163 = scmp.lt.s32.totalorder %s27, 0
          %s164 = scalar_select %p163, %s27, 0
          %s165 = scalar_lea.vmem %s2, %s164
        $region16: #{tpu_custom_call.1} parent=11 // pred_fallthru
          _
      $region12: #{tpu_custom_call.1} parent=5 // pred_fallthru
        _
      %p166 = scmp.lt.s32.totalorder %s16, 3
      // Predicated region
      $region17: #{tpu_custom_call.1} parent=5 // pred_check
        %p167 = pneg %p166
      $region18: #{tpu_custom_call.1} parent=5 // pred_check_branch
        %169 = sbr.rel (%p167) target = $region20
      $region19: #{tpu_custom_call.1} parent=5 // pred_region
        // Predicated region
        $region21: #{tpu_custom_call.1} parent=19 // pred_check
          %p170 = pneg %p57
        $region22: #{tpu_custom_call.1} parent=19 // pred_check_branch
          %172 = sbr.rel (%p170) target = $region24
        $region23: #{tpu_custom_call.1} parent=19 // pred_region
          %s173 = sand.u32 %s47, 1
          %s174 = scalar_lea.sflag [#allocation4], %s173
          %s175 = sand.u32 %s47, 1
          %s176 = smul.addr %s175, 96
          %s177 = scalar_lea.vmem [#allocation3], %s176
          %s178 = smul.u32 8, %s23
          %s179 = smul.u32 3, %s25
          %s181 = ssub.s32 1536, 1536
          %182 = vsyncadd %s174, %s181
          %s183 = smul.addr %s178, 9
          %s184 = sadd.s32 %s179, %s183
          %s185 = smul.addr %s184, 64
          %s186 = scalar_lea.hbm %s0, %s185
          %s187 = sshll.u32 %s177, 4
          %s188 = int_to_ptr.vmem [resolvable:$true] %s187
          %193 = dma.hbm_to_vmem [thread:$0]  %s186, 1536, %s188, %s174, 576, 192, 12
        $region24: #{tpu_custom_call.1} parent=19 // pred_fallthru
          _
        // Predicated region
        $region25: #{tpu_custom_call.1} parent=19 // pred_check
          %p194 = pneg %p85
        $region26: #{tpu_custom_call.1} parent=19 // pred_check_branch
          %196 = sbr.rel (%p194) target = $region28
        $region27: #{tpu_custom_call.1} parent=19 // pred_region
          %s197 = sand.u32 %s75, 1
          %s198 = scalar_lea.sflag [#allocation7], %s197
          %s199 = sand.u32 %s75, 1
          %s200 = smul.addr %s199, 192
          %s201 = scalar_lea.vmem [#allocation6], %s200
          %s202 = smul.u32 48, %s25
          %s204 = ssub.s32 3072, 3072
          %205 = vsyncadd %s198, %s204
          %s206 = sadd.s32 %s24, %s202
          %s207 = smul.addr %s206, 64
          %s208 = scalar_lea.hbm %s1, %s207
          %s209 = sshll.u32 %s201, 4
          %s210 = int_to_ptr.vmem [resolvable:$true] %s209
          %215 = dma.hbm_to_vmem [thread:$0]  %s208, 3072, %s210, %s198, 64, 64, 4
        $region28: #{tpu_custom_call.1} parent=19 // pred_fallthru
          _
      $region20: #{tpu_custom_call.1} parent=5 // pred_fallthru
        _
      %p216 = scmp.le.s32.totalorder 1, %s16
      %p217 = scmp.lt.s32.totalorder %s16, 4
      %p218 = pnand %p216, %p217
      %p219 = pneg %p218
      // Predicated region
      $region29: #{tpu_custom_call.1} parent=5 // pred_check
        _
      $region30: #{tpu_custom_call.1} parent=5 // pred_check_branch
        %221 = sbr.rel (%p218) target = $region32
      $region31: #{tpu_custom_call.1} parent=5 // pred_region
        %s222 = ssub.s32 %s16, 1
        %s223 = sand.u32 %s50, 1
        %s224 = scalar_lea.sflag [#allocation4], %s223
        %s225 = sand.u32 %s50, 1
        %s226 = smul.addr %s225, 96
        %s227 = scalar_lea.vmem [#allocation3], %s226
        // Predicated region
        $region33: #{tpu_custom_call.1} parent=31 // pred_check
          %p228 = pneg %p63
        $region34: #{tpu_custom_call.1} parent=31 // pred_check_branch
          %230 = sbr.rel (%p228) target = $region36
        $region35: #{tpu_custom_call.1} parent=31 // pred_region
          %231 = dma.done %s224, 1536
        $region36: #{tpu_custom_call.1} parent=31 // pred_fallthru
          _
        %s232 = sand.u32 %s78, 1
        %s233 = scalar_lea.sflag [#allocation7], %s232
        %s234 = sand.u32 %s78, 1
        %s235 = smul.addr %s234, 192
        %s236 = scalar_lea.vmem [#allocation6], %s235
        // Predicated region
        $region37: #{tpu_custom_call.1} parent=31 // pred_check
          %p237 = pneg %p91
        $region38: #{tpu_custom_call.1} parent=31 // pred_check_branch
          %239 = sbr.rel (%p237) target = $region40
        $region39: #{tpu_custom_call.1} parent=31 // pred_region
          %240 = dma.done %s233, 3072
        $region40: #{tpu_custom_call.1} parent=31 // pred_fallthru
          _
        %s241 = sand.u32 %s50, 1
        %s242 = scalar_lea.sflag [#allocation4], %s241
        %s243 = sand.u32 %s50, 1
        %s244 = smul.addr %s243, 96
        %s245 = scalar_lea.vmem [#allocation3], %s244
        %p246 = pneg %p63
        %p247 = pneg %p60
        %s248 = sand.u32 %s78, 1
        %s249 = scalar_lea.sflag [#allocation7], %s248
        %s250 = sand.u32 %s78, 1
        %s251 = smul.addr %s250, 192
        %s252 = scalar_lea.vmem [#allocation6], %s251
        %p253 = pneg %p91
        %p254 = pneg %p88
        %p255 = scmp.lt.s32.totalorder %s27, 0
        %s256 = scalar_select %p255, %s27, 0
        %s257 = scalar_lea.vmem %s2, %s256
        %p258 = pneg %p117
        %p259 = pneg %p114
        %p260 = pneg %p145
        %p261 = pneg %p142
        %s262 = smul.u32 8, %s26
        %s263 = smul.u32 3, %s28
        %s264 = smul.u32 48, %s28
        %p265 = scmp.lt.s32.totalorder %s27, 0
        %s266 = scalar_select %p265, %s27, 0
        %s267 = scalar_lea.vmem %s2, %s266
        %s268 = smul.u32 8, %s26
        %p270 = scmp.eq.s32.totalorder %s28, 0
        // Predicated region
        $region41: #{tpu_custom_call.1} parent=31 // pred_check
          %p271 = pneg %p270
        $region42: #{tpu_custom_call.1} parent=31 // pred_check_branch
          %273 = sbr.rel (%p271) target = $region44
        $region43: #{tpu_custom_call.1} parent=31 // pred_region
          %274 = vst [vmem:[#allocation2] sm:$0xff] 0.0
          %275 = vst [vmem:[#allocation2 + $0x8] sm:$0xff] 0.0
          %276 = vst [vmem:[#allocation2 + $0x10] sm:$0xff] 0.0
          %277 = vst [vmem:[#allocation2 + $0x18] sm:$0xff] 0.0
          %278 = vst [vmem:[#allocation2 + $0x20] sm:$0xff] 0.0
          %279 = vst [vmem:[#allocation2 + $0x28] sm:$0xff] 0.0
          %280 = vst [vmem:[#allocation2 + $0x30] sm:$0xff] 0.0
          %281 = vst [vmem:[#allocation2 + $0x38] sm:$0xff] 0.0
        $region44: #{tpu_custom_call.1} parent=31 // pred_fallthru
          _
        %v282 = vld [vmem:[#allocation2] sm:$0xff]
        %v283 = vld [vmem:[#allocation2 + $0x8] sm:$0xff]
        %v284 = vld [vmem:[#allocation2 + $0x10] sm:$0xff]
        %v285 = vld [vmem:[#allocation2 + $0x18] sm:$0xff]
        %v286 = vld [vmem:[#allocation2 + $0x20] sm:$0xff]
        %v287 = vld [vmem:[#allocation2 + $0x28] sm:$0xff]
        %v288 = vld [vmem:[#allocation2 + $0x30] sm:$0xff]
        %v289 = vld [vmem:[#allocation2 + $0x38] sm:$0xff]
        %v290 = vld [vmem:[%s227] sm:$0xff]
        %v291 = vld [vmem:[%s227 + $0x8] sm:$0xf]
        %v292 = vld [vmem:[%s227 + $0xc] sm:$0xff]
        %v293 = vld [vmem:[%s227 + $0x14] sm:$0xf]
        %v294 = vld [vmem:[%s227 + $0x18] sm:$0xff]
        %v295 = vld [vmem:[%s227 + $0x20] sm:$0xf]
        %v296 = vld [vmem:[%s227 + $0x24] sm:$0xff]
        %v297 = vld [vmem:[%s227 + $0x2c] sm:$0xf]
        %v298 = vld [vmem:[%s227 + $0x30] sm:$0xff]
        %v299 = vld [vmem:[%s227 + $0x38] sm:$0xf]
        %v300 = vld [vmem:[%s227 + $0x3c] sm:$0xff]
        %v301 = vld [vmem:[%s227 + $0x44] sm:$0xf]
        %v302 = vld [vmem:[%s227 + $0x48] sm:$0xff]
        %v303 = vld [vmem:[%s227 + $0x50] sm:$0xf]
        %v304 = vld [vmem:[%s227 + $0x54] sm:$0xff]
        %v305 = vld [vmem:[%s227 + $0x5c] sm:$0xf]
        %v306 = vld [vmem:[%s236] sm:$0xf]
        %v307 = vld [vmem:[%s236 + $0x4] sm:$0xf]
        %v308 = vld [vmem:[%s236 + $0x8] sm:$0xf]
        %v309 = vld [vmem:[%s236 + $0xc] sm:$0xf]
        %v310 = vld [vmem:[%s236 + $0x10] sm:$0xf]
        %v311 = vld [vmem:[%s236 + $0x14] sm:$0xf]
        %v312 = vld [vmem:[%s236 + $0x18] sm:$0xf]
        %v313 = vld [vmem:[%s236 + $0x1c] sm:$0xf]
        %v314 = vld [vmem:[%s236 + $0x20] sm:$0xf]
        %v315 = vld [vmem:[%s236 + $0x24] sm:$0xf]
        %v316 = vld [vmem:[%s236 + $0x28] sm:$0xf]
        %v317 = vld [vmem:[%s236 + $0x2c] sm:$0xf]
        %v318 = vld [vmem:[%s236 + $0x30] sm:$0xf]
        %v319 = vld [vmem:[%s236 + $0x34] sm:$0xf]
        %v320 = vld [vmem:[%s236 + $0x38] sm:$0xf]
        %v321 = vld [vmem:[%s236 + $0x3c] sm:$0xf]
        %v322 = vld [vmem:[%s236 + $0x40] sm:$0xf]
        %v323 = vld [vmem:[%s236 + $0x44] sm:$0xf]
        %v324 = vld [vmem:[%s236 + $0x48] sm:$0xf]
        %v325 = vld [vmem:[%s236 + $0x4c] sm:$0xf]
        %v326 = vld [vmem:[%s236 + $0x50] sm:$0xf]
        %v327 = vld [vmem:[%s236 + $0x54] sm:$0xf]
        %v328 = vld [vmem:[%s236 + $0x58] sm:$0xf]
        %v329 = vld [vmem:[%s236 + $0x5c] sm:$0xf]
        %v330 = vld [vmem:[%s236 + $0x60] sm:$0xf]
        %v331 = vld [vmem:[%s236 + $0x64] sm:$0xf]
        %v332 = vld [vmem:[%s236 + $0x68] sm:$0xf]
        %v333 = vld [vmem:[%s236 + $0x6c] sm:$0xf]
        %v334 = vld [vmem:[%s236 + $0x70] sm:$0xf]
        %v335 = vld [vmem:[%s236 + $0x74] sm:$0xf]
        %v336 = vld [vmem:[%s236 + $0x78] sm:$0xf]
        %v337 = vld [vmem:[%s236 + $0x7c] sm:$0xf]
        %v338 = vld [vmem:[%s236 + $0x80] sm:$0xf]
        %v339 = vld [vmem:[%s236 + $0x84] sm:$0xf]
        %v340 = vld [vmem:[%s236 + $0x88] sm:$0xf]
        %v341 = vld [vmem:[%s236 + $0x8c] sm:$0xf]
        %v342 = vld [vmem:[%s236 + $0x90] sm:$0xf]
        %v343 = vld [vmem:[%s236 + $0x94] sm:$0xf]
        %v344 = vld [vmem:[%s236 + $0x98] sm:$0xf]
        %v345 = vld [vmem:[%s236 + $0x9c] sm:$0xf]
        %v346 = vld [vmem:[%s236 + $0xa0] sm:$0xf]
        %v347 = vld [vmem:[%s236 + $0xa4] sm:$0xf]
        %v348 = vld [vmem:[%s236 + $0xa8] sm:$0xf]
        %v349 = vld [vmem:[%s236 + $0xac] sm:$0xf]
        %v350 = vld [vmem:[%s236 + $0xb0] sm:$0xf]
        %v351 = vld [vmem:[%s236 + $0xb4] sm:$0xf]
        %v352 = vld [vmem:[%s236 + $0xb8] sm:$0xf]
        %v353 = vld [vmem:[%s236 + $0xbc] sm:$0xf]
        %v370 = vunpack.c.l.b16 %v290
        %v371 = vunpack.c.h.b16 %v290
        %v372 = vunpack.c.l.b16 %v291
        %v373 = vunpack.c.l.b16 %v292
        %v374 = vunpack.c.h.b16 %v292
        %v375 = vunpack.c.l.b16 %v293
        %v376 = vunpack.c.l.b16 %v294
        %v377 = vunpack.c.h.b16 %v294
        %v378 = vunpack.c.l.b16 %v295
        %v379 = vunpack.c.l.b16 %v296
        %v380 = vunpack.c.h.b16 %v296
        %v381 = vunpack.c.l.b16 %v297
        %v382 = vunpack.c.l.b16 %v298
        %v383 = vunpack.c.h.b16 %v298
        %v384 = vunpack.c.l.b16 %v299
        %v385 = vunpack.c.l.b16 %v300
        %v386 = vunpack.c.h.b16 %v300
        %v387 = vunpack.c.l.b16 %v301
        %v388 = vunpack.c.l.b16 %v302
        %v389 = vunpack.c.h.b16 %v302
        %v390 = vunpack.c.l.b16 %v303
        %v391 = vunpack.c.l.b16 %v304
        %v392 = vunpack.c.h.b16 %v304
        %v393 = vunpack.c.l.b16 %v305
        %v394 = vpack.c.b16 %v373, %v370
        %v395 = vpack.c.b16 %v374, %v371
        %v396 = vpack.c.b16 %v375, %v372
        %v397 = vpack.c.b16 %v379, %v376
        %v398 = vpack.c.b16 %v380, %v377
        %v399 = vpack.c.b16 %v381, %v378
        %v400 = vpack.c.b16 %v385, %v382
        %v401 = vpack.c.b16 %v386, %v383
        %v402 = vpack.c.b16 %v387, %v384
        %v403 = vpack.c.b16 %v391, %v388
        %v404 = vpack.c.b16 %v392, %v389
        %v405 = vpack.c.b16 %v393, %v390
        %v466 = vunpack.c.l.b16 %v306
        %v467 = vunpack.c.l.b16 %v307
        %v468 = vunpack.c.l.b16 %v308
        %v469 = vunpack.c.l.b16 %v309
        %v470 = vunpack.c.l.b16 %v310
        %v471 = vunpack.c.l.b16 %v311
        %v472 = vunpack.c.l.b16 %v312
        %v473 = vunpack.c.l.b16 %v313
        %v474 = vunpack.c.l.b16 %v314
        %v475 = vunpack.c.l.b16 %v315
        %v476 = vunpack.c.l.b16 %v316
        %v477 = vunpack.c.l.b16 %v317
        %v478 = vunpack.c.l.b16 %v318
        %v479 = vunpack.c.l.b16 %v319
        %v480 = vunpack.c.l.b16 %v320
        %v481 = vunpack.c.l.b16 %v321
        %v482 = vunpack.c.l.b16 %v322
        %v483 = vunpack.c.l.b16 %v323
        %v484 = vunpack.c.l.b16 %v324
        %v485 = vunpack.c.l.b16 %v325
        %v486 = vunpack.c.l.b16 %v326
        %v487 = vunpack.c.l.b16 %v327
        %v488 = vunpack.c.l.b16 %v328
        %v489 = vunpack.c.l.b16 %v329
        %v490 = vunpack.c.l.b16 %v330
        %v491 = vunpack.c.l.b16 %v331
        %v492 = vunpack.c.l.b16 %v332
        %v493 = vunpack.c.l.b16 %v333
        %v494 = vunpack.c.l.b16 %v334
        %v495 = vunpack.c.l.b16 %v335
        %v496 = vunpack.c.l.b16 %v336
        %v497 = vunpack.c.l.b16 %v337
        %v498 = vunpack.c.l.b16 %v338
        %v499 = vunpack.c.l.b16 %v339
        %v500 = vunpack.c.l.b16 %v340
        %v501 = vunpack.c.l.b16 %v341
        %v502 = vunpack.c.l.b16 %v342
        %v503 = vunpack.c.l.b16 %v343
        %v504 = vunpack.c.l.b16 %v344
        %v505 = vunpack.c.l.b16 %v345
        %v506 = vunpack.c.l.b16 %v346
        %v507 = vunpack.c.l.b16 %v347
        %v508 = vunpack.c.l.b16 %v348
        %v509 = vunpack.c.l.b16 %v349
        %v510 = vunpack.c.l.b16 %v350
        %v511 = vunpack.c.l.b16 %v351
        %v512 = vunpack.c.l.b16 %v352
        %v513 = vunpack.c.l.b16 %v353
        %v514 = vpack.c.b16 %v467, %v466
        %v515 = vpack.c.b16 %v469, %v468
        %v516 = vpack.c.b16 %v471, %v470
        %v517 = vpack.c.b16 %v473, %v472
        %v518 = vpack.c.b16 %v475, %v474
        %v519 = vpack.c.b16 %v477, %v476
        %v520 = vpack.c.b16 %v479, %v478
        %v521 = vpack.c.b16 %v481, %v480
        %v522 = vpack.c.b16 %v483, %v482
        %v523 = vpack.c.b16 %v485, %v484
        %v524 = vpack.c.b16 %v487, %v486
        %v525 = vpack.c.b16 %v489, %v488
        %v526 = vpack.c.b16 %v491, %v490
        %v527 = vpack.c.b16 %v493, %v492
        %v528 = vpack.c.b16 %v495, %v494
        %v529 = vpack.c.b16 %v497, %v496
        %v530 = vpack.c.b16 %v499, %v498
        %v531 = vpack.c.b16 %v501, %v500
        %v532 = vpack.c.b16 %v503, %v502
        %v533 = vpack.c.b16 %v505, %v504
        %v534 = vpack.c.b16 %v507, %v506
        %v535 = vpack.c.b16 %v509, %v508
        %v536 = vpack.c.b16 %v511, %v510
        %v537 = vpack.c.b16 %v513, %v512
        %562 = vmatprep.subr.bf16.mxu0 0
        %563 = vmatpush1.bf16.msra.mxu0 %v514
        %564 = vmatprep.subr.bf16.mxu0 0
        %565 = vmatpush1.bf16.msra.mxu0 %v515
        %566 = vmatprep.subr.bf16.mxu0 0
        %567 = vmatpush1.bf16.msra.mxu0 %v516
        %568 = vmatprep.subr.bf16.mxu0 0
        %569 = vmatpush1.bf16.msra.mxu0 %v517
        %570 = vmatprep.subr.bf16.mxu0 0
        %571 = vmatpush1.bf16.msra.mxu0 %v518
        %572 = vmatprep.subr.bf16.mxu0 0
        %573 = vmatpush1.bf16.msra.mxu0 %v519
        %574 = vmatprep.subr.bf16.mxu0 0
        %575 = vmatpush1.bf16.msra.mxu0 %v520
        %576 = vmatprep.subr.bf16.mxu0 0
        %577 = vmatpush1.bf16.msra.mxu0 %v521
        %578 = vmatprep.subr.bf16.mxu0 0
        %579 = vmatpush1.bf16.msra.mxu0 %v522
        %580 = vmatprep.subr.bf16.mxu0 0
        %581 = vmatpush1.bf16.msra.mxu0 %v523
        %582 = vmatprep.subr.bf16.mxu0 0
        %583 = vmatpush1.bf16.msra.mxu0 %v524
        %584 = vmatprep.subr.bf16.mxu0 0
        %585 = vmatpush1.bf16.msra.mxu0 %v525
        %586 = vmatprep.subr.bf16.mxu0 0
        %587 = vmatpush1.bf16.msra.mxu0 %v526
        %588 = vmatprep.subr.bf16.mxu0 0
        %589 = vmatpush1.bf16.msra.mxu0 %v527
        %590 = vmatprep.subr.bf16.mxu0 0
        %591 = vmatpush1.bf16.msra.mxu0 %v528
        %592 = vmatprep.subr.bf16.mxu0 0
        %593 = vmatpush1.bf16.msra.mxu0 %v529
        %594 = vmatprep.mubr.bf16.mxu0 %v395
        %595 = vmatmul.mubr.bf16.gmra.mrb[0].mxu0 %v394
        %v596 = vpop.f32.mrb[0].mxu0
        %v597 = vadd.f32 0.0, %v596
        %v598 = vpop.f32.mrb[0].mxu0
        %v599 = vpop.f32.mrb[0].mxu0
        %v600 = vadd.f32 0.0, %v599
        %v601 = vpop.f32.mrb[0].mxu0
        %602 = vmatprep.mubr.bf16.mxu0 %v398
        %603 = vmatmul.mubr.bf16.gmra.mrb[0].mxu0 %v397
        %v604 = vpop.f32.mrb[0].mxu0
        %v605 = vadd.f32 0.0, %v604
        %v606 = vpop.f32.mrb[0].mxu0
        %v607 = vpop.f32.mrb[0].mxu0
        %v608 = vadd.f32 0.0, %v607
        %v609 = vpop.f32.mrb[0].mxu0
        %610 = vmatprep.mubr.bf16.mxu0 %v401
        %611 = vmatmul.mubr.bf16.gmra.mrb[0].mxu0 %v400
        %v612 = vpop.f32.mrb[0].mxu0
        %v613 = vadd.f32 0.0, %v612
        %v614 = vpop.f32.mrb[0].mxu0
        %v615 = vpop.f32.mrb[0].mxu0
        %v616 = vadd.f32 0.0, %v615
        %v617 = vpop.f32.mrb[0].mxu0
        %618 = vmatprep.mubr.bf16.mxu0 %v404
        %619 = vmatmul.mubr.bf16.gmra.mrb[0].mxu0 %v403
        %v620 = vpop.f32.mrb[0].mxu0
        %v621 = vadd.f32 0.0, %v620
        %v622 = vpop.f32.mrb[0].mxu0
        %v623 = vpop.f32.mrb[0].mxu0
        %v624 = vadd.f32 0.0, %v623
        %v625 = vpop.f32.mrb[0].mxu0
        %626 = vdwg.mxu0
        %627 = vmatprep.subr.bf16.mxu0 0
        %628 = vmatpush1.bf16.msra.mxu0 %v530
        %629 = vmatprep.subr.bf16.mxu0 0
        %630 = vmatpush1.bf16.msra.mxu0 %v531
        %631 = vmatprep.subr.bf16.mxu0 0
        %632 = vmatpush1.bf16.msra.mxu0 %v532
        %633 = vmatprep.subr.bf16.mxu0 0
        %634 = vmatpush1.bf16.msra.mxu0 %v533
        %635 = vmatprep.subr.bf16.mxu0 0
        %636 = vmatpush1.bf16.msra.mxu0 %v534
        %637 = vmatprep.subr.bf16.mxu0 0
        %638 = vmatpush1.bf16.msra.mxu0 %v535
        %639 = vmatprep.subr.bf16.mxu0 0
        %640 = vmatpush1.bf16.msra.mxu0 %v536
        %641 = vmatprep.subr.bf16.mxu0 0
        %642 = vmatpush1.bf16.msra.mxu0 %v537
        %643 = vmatprep.subr.bf16.mxu0 0
        %644 = vmatpush1.bf16.msra.mxu0 0
        %645 = vmatprep.subr.bf16.mxu0 0
        %646 = vmatpush1.bf16.msra.mxu0 0
        %647 = vmatprep.subr.bf16.mxu0 0
        %648 = vmatpush1.bf16.msra.mxu0 0
        %649 = vmatprep.subr.bf16.mxu0 0
        %650 = vmatpush1.bf16.msra.mxu0 0
        %651 = vmatprep.subr.bf16.mxu0 0
        %652 = vmatpush1.bf16.msra.mxu0 0
        %653 = vmatprep.subr.bf16.mxu0 0
        %654 = vmatpush1.bf16.msra.mxu0 0
        %655 = vmatprep.subr.bf16.mxu0 0
        %656 = vmatpush1.bf16.msra.mxu0 0
        %657 = vmatprep.subr.bf16.mxu0 0
        %658 = vmatpush1.bf16.msra.mxu0 0
        %659 = vmatprep.mubr.bf16.mxu0 0
        %660 = vmatmul.mubr.bf16.gmra.mrb[0].mxu0 %v396
        %v661 = vpop.f32.mrb[0].mxu0
        %v662 = vadd.f32 %v597, %v661
        %v663 = vpop.f32.mrb[0].mxu0
        %v664 = vpop.f32.mrb[0].mxu0
        %v665 = vadd.f32 %v600, %v664
        %v666 = vpop.f32.mrb[0].mxu0
        %667 = vmatprep.mubr.bf16.mxu0 0
        %668 = vmatmul.mubr.bf16.gmra.mrb[0].mxu0 %v399
        %v669 = vpop.f32.mrb[0].mxu0
        %v670 = vadd.f32 %v605, %v669
        %v671 = vpop.f32.mrb[0].mxu0
        %v672 = vpop.f32.mrb[0].mxu0
        %v673 = vadd.f32 %v608, %v672
        %v674 = vpop.f32.mrb[0].mxu0
        %675 = vmatprep.mubr.bf16.mxu0 0
        %676 = vmatmul.mubr.bf16.gmra.mrb[0].mxu0 %v402
        %v677 = vpop.f32.mrb[0].mxu0
        %v678 = vadd.f32 %v613, %v677
        %v679 = vpop.f32.mrb[0].mxu0
        %v680 = vpop.f32.mrb[0].mxu0
        %v681 = vadd.f32 %v616, %v680
        %v682 = vpop.f32.mrb[0].mxu0
        %683 = vmatprep.mubr.bf16.mxu0 0
        %684 = vmatmul.mubr.bf16.gmra.mrb[0].mxu0 %v405
        %v685 = vpop.f32.mrb[0].mxu0
        %v686 = vadd.f32 %v621, %v685
        %v687 = vpop.f32.mrb[0].mxu0
        %v688 = vpop.f32.mrb[0].mxu0
        %v689 = vadd.f32 %v624, %v688
        %v690 = vpop.f32.mrb[0].mxu0
        %691 = vdwg.mxu0
        %v692 = vadd.f32 %v282, %v662
        %v693 = vadd.f32 %v283, %v665
        %v694 = vadd.f32 %v284, %v670
        %v695 = vadd.f32 %v285, %v673
        %v696 = vadd.f32 %v286, %v678
        %v697 = vadd.f32 %v287, %v681
        %v698 = vadd.f32 %v288, %v686
        %v699 = vadd.f32 %v289, %v689
        %700 = vst [vmem:[#allocation2] sm:$0xff] %v692
        %701 = vst [vmem:[#allocation2 + $0x8] sm:$0xff] %v693
        %702 = vst [vmem:[#allocation2 + $0x10] sm:$0xff] %v694
        %703 = vst [vmem:[#allocation2 + $0x18] sm:$0xff] %v695
        %704 = vst [vmem:[#allocation2 + $0x20] sm:$0xff] %v696
        %705 = vst [vmem:[#allocation2 + $0x28] sm:$0xff] %v697
        %706 = vst [vmem:[#allocation2 + $0x30] sm:$0xff] %v698
        %707 = vst [vmem:[#allocation2 + $0x38] sm:$0xff] %v699
        %p708 = scmp.eq.s32.totalorder %s28, 2
        // Predicated region
        $region45: #{tpu_custom_call.1} parent=31 // pred_check
          %p709 = pneg %p708
        $region46: #{tpu_custom_call.1} parent=31 // pred_check_branch
          %711 = sbr.rel (%p709) target = $region48
        $region47: #{tpu_custom_call.1} parent=31 // pred_region
          %v712 = vld [vmem:[#allocation2] sm:$0xff]
          %v713 = vld [vmem:[#allocation2 + $0x8] sm:$0xff]
          %v714 = vld [vmem:[#allocation2 + $0x10] sm:$0xff]
          %v715 = vld [vmem:[#allocation2 + $0x18] sm:$0xff]
          %v716 = vld [vmem:[#allocation2 + $0x20] sm:$0xff]
          %v717 = vld [vmem:[#allocation2 + $0x28] sm:$0xff]
          %v718 = vld [vmem:[#allocation2 + $0x30] sm:$0xff]
          %v719 = vld [vmem:[#allocation2 + $0x38] sm:$0xff]
          %v720 = vld [vmem:[%s267] sm:$0x1]
          %v722 = vlaneseq
          %v723 = vshrl.u32 %v722, 7
          %v724 = vsub.s32 0, %v723
          %v725 = vrot.slane %v720, %v724
          %v727 = vadd.f32 %v712, %v725
          %v728 = vadd.f32 %v713, %v725
          %v729 = vadd.f32 %v714, %v725
          %v730 = vadd.f32 %v715, %v725
          %v731 = vadd.f32 %v716, %v725
          %v732 = vadd.f32 %v717, %v725
          %v733 = vadd.f32 %v718, %v725
          %v734 = vadd.f32 %v719, %v725
          %v735 = vpack.c.bf16 %v728, %v727
          %v736 = vpack.c.bf16 %v730, %v729
          %v737 = vpack.c.bf16 %v732, %v731
          %v738 = vpack.c.bf16 %v734, %v733
          %v743 = vunpack.c.l.b16 %v735
          %v744 = vunpack.c.h.b16 %v735
          %v745 = vunpack.c.l.b16 %v736
          %v746 = vunpack.c.h.b16 %v736
          %v747 = vunpack.c.l.b16 %v737
          %v748 = vunpack.c.h.b16 %v737
          %v749 = vunpack.c.l.b16 %v738
          %v750 = vunpack.c.h.b16 %v738
          %v751 = vpack.c.b16 %v743, %v743
          %v752 = vpack.c.b16 %v744, %v744
          %v753 = vpack.c.b16 %v745, %v745
          %v754 = vpack.c.b16 %v746, %v746
          %v755 = vpack.c.b16 %v747, %v747
          %v756 = vpack.c.b16 %v748, %v748
          %v757 = vpack.c.b16 %v749, %v749
          %v758 = vpack.c.b16 %v750, %v750
          %767 = vst [vmem:[#allocation8] sm:$0xf] %v751
          %768 = vst [vmem:[#allocation8 + $0x4] sm:$0xf] %v752
          %769 = vst [vmem:[#allocation8 + $0x8] sm:$0xf] %v753
          %770 = vst [vmem:[#allocation8 + $0xc] sm:$0xf] %v754
          %771 = vst [vmem:[#allocation8 + $0x10] sm:$0xf] %v755
          %772 = vst [vmem:[#allocation8 + $0x14] sm:$0xf] %v756
          %773 = vst [vmem:[#allocation8 + $0x18] sm:$0xf] %v757
          %774 = vst [vmem:[#allocation8 + $0x1c] sm:$0xf] %v758
        $region48: #{tpu_custom_call.1} parent=31 // pred_fallthru
          _
        // Predicated region
        $region49: #{tpu_custom_call.1} parent=31 // pred_check
          %p775 = pneg %p142
        $region50: #{tpu_custom_call.1} parent=31 // pred_check_branch
          %777 = sbr.rel (%p775) target = $region52
        $region51: #{tpu_custom_call.1} parent=31 // pred_region
          %s778 = smul.u32 8, %s26
          %s780 = ssub.s32 512, 512
          %781 = vsyncadd [#allocation5], %s780
          %s782 = sadd.s32 %s27, %s778
          %s783 = smul.addr %s782, 64
          %s784 = scalar_lea.hbm %s3, %s783
          %s785 = sshll.u32 [#allocation8], 4
          %s786 = int_to_ptr.vmem [resolvable:$true] %s785
          %791 = dma.vmem_to_hbm [thread:$0]  %s786, 512, %s784, [#allocation5], 64, 64, 4
        $region52: #{tpu_custom_call.1} parent=31 // pred_fallthru
          _
        // Predicated region
        $region53: #{tpu_custom_call.1} parent=31 // pred_check
          %p792 = pneg %p142
        $region54: #{tpu_custom_call.1} parent=31 // pred_check_branch
          %794 = sbr.rel (%p792) target = $region56
        $region55: #{tpu_custom_call.1} parent=31 // pred_region
          %795 = dma.done [#allocation5], 512
        $region56: #{tpu_custom_call.1} parent=31 // pred_fallthru
          _
      $region32: #{tpu_custom_call.1} parent=5 // pred_fallthru
        _
      %p796 = scmp.le.s32.totalorder 2, %s16
      // Predicated region
      $region57: #{tpu_custom_call.1} parent=5 // pred_check
        %p797 = pneg %p796
      $region58: #{tpu_custom_call.1} parent=5 // pred_check_branch
        %799 = sbr.rel (%p797) target = $region60
      $region59: #{tpu_custom_call.1} parent=5 // pred_region
        %s800 = ssub.s32 %s16, 2
      $region60: #{tpu_custom_call.1} parent=5 // pred_fallthru
        _
    $region6: #{tpu_custom_call.1} parent=1 // loop_footer
      %s20 = sadd.s32 1, %s16
    $region7: #{tpu_custom_call.1} parent=1 // loop_footer_branch
      %15 = sbr.rel target = $region3
    $region8: #{tpu_custom_call.1} parent=1 // loop_exit
      _
    %801 = vsyncpa [#allocation4], 1
    %s802 = scalar_lea.sflag [#allocation4], 1
    %803 = vsyncpa %s802, 1
    %804 = vsyncpa [#allocation7], 1
    %s805 = scalar_lea.sflag [#allocation7], 1
    %806 = vsyncpa %s805, 1
    %807 = vsyncpa [#allocation5], 1
    %s808 = scalar_lea.sflag [#allocation5], 1
    %809 = vsyncpa %s808, 1

</llo_original>
